<compile_context>
chip_gen: v7x
topology: tpu7x:2x2x1
jax: 0.10.0
libtpu: 0.0.40
codegen_flags: <defaults>
</compile_context>

<pallas_src>
import functools

import jax
import jax.numpy as jnp
from jax import lax
from jax.experimental import pallas as pl
from jax.experimental.pallas import tpu as pltpu


def _round_up(x, m):
    return (x + m - 1) // m * m


def _sepconv1d_kernel(x_ref, wf_ref, b_ref, o_ref, xp_ref, *,
                      kernel, stride, pad, l_in, l_out_pad, b_tile):
    """Fused (depthwise -> pointwise -> ReLU) for a tile of B_TILE batch elements.

    x_ref : (B_TILE, ni, L)         input, compute dtype (f32 or bf16), unpadded
    wf_ref: (K, no, ni)             fused weights Wf[k] = w_pw * w_dw[:, k]
    b_ref : (no, 1)                 combined bias (f32)
    o_ref : (B_TILE, no, Lout_pad)  output (f32), lane-dense (Lout_pad % 128 == 0)
    xp_ref: (B_TILE, ni, Lp)        VMEM scratch: zero-padded working copy of x
    """
    ni = x_ref.shape[1]
    lp = xp_ref.shape[-1]
    dt = xp_ref.dtype

    # Materialise conv edge padding in VMEM (only the edge slabs are zeroed).
    if pad > 0:
        xp_ref[:, :, 0:pad] = jnp.zeros((b_tile, ni, pad), dt)
    right = lp - pad - l_in
    if right > 0:
        xp_ref[:, :, pad + l_in:lp] = jnp.zeros((b_tile, ni, right), dt)
    xp_ref[:, :, pad:pad + l_in] = x_ref[...]

    bias = b_ref[...]                                  # (no, 1) f32, hoisted

    for b in range(b_tile):                            # static unroll over batch tile
        acc = None
        for k in range(kernel):                        # static unroll over taps
            if stride == 1:
                tap = xp_ref[b, :, pl.ds(k, l_out_pad)]
            else:
                # Strided ref read (vld path) instead of cross-lane gather on a value.
                tap = xp_ref[b, :, pl.ds(k, l_out_pad, stride=stride)]
            part = jnp.dot(wf_ref[k], tap, preferred_element_type=jnp.float32)
            acc = part if acc is None else acc + part
        y = acc + bias                                 # broadcast over lanes
        o_ref[b] = jnp.maximum(y, 0.0).astype(o_ref.dtype)
    # TODO(synk): nn.Dropout (drop=...) is a training-time op; omitted (eval mode).


def _pick_batch_tile(n, per_elem_bytes, vmem_cap=4 * 1024 * 1024):
    """Largest divisor of n that fits the VMEM cap, preferring >= 2 grid steps."""
    divisors = [d for d in range(1, n + 1) if n % d == 0]
    fitting = [d for d in divisors if d * per_elem_bytes <= vmem_cap] or [1]
    two_step = [d for d in fitting if n // d >= 2]
    return max(two_step) if two_step else max(fitting)


def sepconv1d(x, w_dw, b_dw, w_pw, b_pw, *, kernel, stride, pad,
              compute_dtype=jnp.bfloat16):
    """x: (N, ni, L) f32 -> (N, no, L_out) f32.  Matches PyTorch SepConv1d (eval)."""
    n, ni, l_in = x.shape
    no = w_pw.shape[0]
    l_out = (l_in + 2 * pad - kernel) // stride + 1
    l_out_pad = max(128, _round_up(l_out, 128))          # lane-dense output stores
    lp_work = max(stride * (l_out_pad - 1) + kernel, pad + l_in)

    # Fuse depthwise into the pointwise matmul (done once, in f32, in the wrapper):
    #   Wf[k][o, c] = w_pw[o, c] * w_dw[c, k]   -> (K, no, ni)
    #   b_comb      = b_pw + w_pw @ b_dw        -> (no, 1)
    w_dw = w_dw.reshape(ni, kernel).astype(jnp.float32)
    w_pw = w_pw.reshape(no, ni).astype(jnp.float32)
    wf = (w_pw[None, :, :] * w_dw.T[:, None, :]).astype(compute_dtype)
    b_comb = (b_pw.reshape(no, 1) + w_pw @ b_dw.reshape(ni, 1)).astype(jnp.float32)

    x_c = x.astype(compute_dtype)
    itemsize = jnp.dtype(compute_dtype).itemsize

    # Per-batch-element VMEM footprint (double-buffered in/out blocks + scratch).
    per_elem = (2 * ni * l_in * itemsize
                + 2 * no * l_out_pad * 4
                + ni * lp_work * itemsize)
    b_tile = _pick_batch_tile(n, per_elem)
    # TODO(synk): for very long sequences add a length-tiling grid axis (K-1 halo)
    # instead of loading the full length per batch element.

    kern = functools.partial(
        _sepconv1d_kernel, kernel=kernel, stride=stride, pad=pad,
        l_in=l_in, l_out_pad=l_out_pad, b_tile=b_tile)

    flops = 2 * kernel * no * ni * l_out_pad * n
    bytes_accessed = (x_c.size * itemsize + wf.size * itemsize
                      + b_comb.size * 4 + n * no * l_out_pad * 4)

    cp_kwargs = dict(dimension_semantics=("parallel",))
    est_vmem = b_tile * per_elem + wf.size * itemsize + b_comb.size * 4
    if est_vmem > 32 * 1024 * 1024:
        cp_kwargs["vmem_limit_bytes"] = min(int(est_vmem * 5 // 4), 96 * 1024 * 1024)

    out = pl.pallas_call(
        kern,
        out_shape=jax.ShapeDtypeStruct((n, no, l_out_pad), jnp.float32),
        grid_spec=pltpu.PrefetchScalarGridSpec(
            num_scalar_prefetch=0,
            grid=(n // b_tile,),
            in_specs=[
                pl.BlockSpec((b_tile, ni, l_in), lambda b: (b, 0, 0)),   # x
                pl.BlockSpec((kernel, no, ni), lambda b: (0, 0, 0)),     # fused W
                pl.BlockSpec((no, 1), lambda b: (0, 0)),                 # fused bias
            ],
            out_specs=pl.BlockSpec((b_tile, no, l_out_pad), lambda b: (b, 0, 0)),
            scratch_shapes=[pltpu.VMEM((b_tile, ni, lp_work), compute_dtype)],
        ),
        compiler_params=pltpu.CompilerParams(**cp_kwargs),
        cost_estimate=pl.CostEstimate(flops=flops, transcendentals=0,
                                      bytes_accessed=bytes_accessed),
    )(x_c, wf, b_comb)

    if l_out_pad != l_out:
        out = out[:, :, :l_out]
    return out


def _reference(x, w_dw, b_dw, w_pw, b_pw, *, kernel, stride, pad):
    """Plain-JAX reference matching PyTorch Conv1d semantics (f32)."""
    ni = x.shape[1]
    dw = lax.conv_general_dilated(
        x, w_dw.reshape(ni, 1, kernel),
        window_strides=(stride,), padding=[(pad, pad)],
        dimension_numbers=("NCH", "OIH", "NCH"),
        feature_group_count=ni)
    dw = dw + b_dw.reshape(1, ni, 1)
    pw = lax.conv_general_dilated(
        dw, w_pw[..., None],
        window_strides=(1,), padding=[(0, 0)],
        dimension_numbers=("NCH", "OIH", "NCH"))
    pw = pw + b_pw.reshape(1, -1, 1)
    return jnp.maximum(pw, 0.0)


if __name__ == "__main__":
    key = jax.random.PRNGKey(0)

    def make_case(k, batch, ni, no, length, kernel, stride, pad):
        kx, k1, k2, k3, k4 = jax.random.split(k, 5)
        x = jax.random.normal(kx, (batch, ni, length), dtype=jnp.float32)
        w_dw = jax.random.normal(k1, (ni, kernel), dtype=jnp.float32) * 0.3
        b_dw = jax.random.normal(k2, (ni, 1), dtype=jnp.float32) * 0.1
        w_pw = jax.random.normal(k3, (no, ni), dtype=jnp.float32) * 0.3
        b_pw = jax.random.normal(k4, (no, 1), dtype=jnp.float32) * 0.1
        return x, w_dw, b_dw, w_pw, b_pw

    k0, k1 = jax.random.split(key)

    # Case 1: tiny config (as the original module test), exact f32 compute path.
    hp1 = dict(kernel=3, stride=1, pad=1)
    args1 = make_case(k0, batch=2, ni=4, no=8, length=16, **hp1)
    out1 = jax.block_until_ready(
        sepconv1d(*args1, **hp1, compute_dtype=jnp.float32))
    ref1 = _reference(*args1, **hp1)
    assert out1.shape == ref1.shape, (out1.shape, ref1.shape)
    assert jnp.allclose(out1, ref1, atol=1e-4, rtol=1e-4), \
        float(jnp.max(jnp.abs(out1 - ref1)))

    # Case 2: larger config with bf16 compute (exercises batch tiling B_TILE=2,
    # lane-padding of the output length, and multiple parallel grid steps).
    hp2 = dict(kernel=5, stride=1, pad=2)
    args2 = make_case(k1, batch=4, ni=8, no=16, length=200, **hp2)
    out2 = jax.block_until_ready(
        sepconv1d(*args2, **hp2, compute_dtype=jnp.bfloat16))
    ref2 = _reference(*args2, **hp2)
    assert out2.shape == ref2.shape, (out2.shape, ref2.shape)
    assert jnp.allclose(out2, ref2, atol=7e-2, rtol=7e-2), \
        float(jnp.max(jnp.abs(out2 - ref2)))

    print("KERNEL_OK")
</pallas_src>

<mosaic_0001>
module attributes {stable_mosaic.version = 11 : i64} {
  func.func @_sepconv1d_kernel(%arg0: i32, %arg1: memref<1x4x16xf32, #tpu.memory_space<vmem>>, %arg2: memref<3x8x4xf32, #tpu.memory_space<vmem>>, %arg3: memref<8x1xf32, #tpu.memory_space<vmem>>, %arg4: memref<1x8x128xf32, #tpu.memory_space<vmem>>, %arg5: memref<1x4x130xf32, #tpu.memory_space<vmem>>) attributes {dimension_semantics = [#tpu.dimension_semantics<parallel>], iteration_bounds = array<i64: 2>, scalar_prefetch = 0 : i64, scratch_operands = 1 : i64, tpu.core_type = #tpu.core_type<tc>, window_params = [{transform_indices = @transform_0, window_bounds = array<i64: 1, 4, 16>}, {pipeline_mode = #tpu.pipeline_mode<synchronous>, transform_indices = @transform_1, window_bounds = array<i64: 3, 8, 4>}, {pipeline_mode = #tpu.pipeline_mode<synchronous>, transform_indices = @transform_2, window_bounds = array<i64: 8, 1>}, {transform_indices = @transform_3, window_bounds = array<i64: 1, 8, 128>}]} {
    %cst = arith.constant 0.000000e+00 : f32
    %0 = vector.broadcast %cst : f32 to vector<1x4x1xf32>
    %c0 = arith.constant 0 : index
    %c0_0 = arith.constant 0 : index
    %c0_1 = arith.constant 0 : index
    %1 = vector.load %arg5[%c0, %c0_0, %c0_1] : memref<1x4x130xf32, #tpu.memory_space<vmem>>, vector<1x4x1xf32>
    tpu.vector_store %arg5[%c0, %c0_0, %c0_1], %0 {strides = array<i32>} : memref<1x4x130xf32, #tpu.memory_space<vmem>>, vector<1x4x1xf32>,
    %cst_2 = arith.constant 0.000000e+00 : f32
    %2 = vector.broadcast %cst_2 : f32 to vector<1x4x113xf32>
    %c0_3 = arith.constant 0 : index
    %c0_4 = arith.constant 0 : index
    %c17 = arith.constant 17 : index
    %3 = vector.load %arg5[%c0_3, %c0_4, %c17] : memref<1x4x130xf32, #tpu.memory_space<vmem>>, vector<1x4x113xf32>
    tpu.vector_store %arg5[%c0_3, %c0_4, %c17], %2 {strides = array<i32>} : memref<1x4x130xf32, #tpu.memory_space<vmem>>, vector<1x4x113xf32>,
    %c0_5 = arith.constant 0 : index
    %c0_6 = arith.constant 0 : index
    %c0_7 = arith.constant 0 : index
    %4 = vector.load %arg1[%c0_5, %c0_6, %c0_7] : memref<1x4x16xf32, #tpu.memory_space<vmem>>, vector<1x4x16xf32>
    %c0_8 = arith.constant 0 : index
    %c0_9 = arith.constant 0 : index
    %c1 = arith.constant 1 : index
    %5 = vector.load %arg5[%c0_8, %c0_9, %c1] : memref<1x4x130xf32, #tpu.memory_space<vmem>>, vector<1x4x16xf32>
    tpu.vector_store %arg5[%c0_8, %c0_9, %c1], %4 {strides = array<i32>} : memref<1x4x130xf32, #tpu.memory_space<vmem>>, vector<1x4x16xf32>,
    %c0_10 = arith.constant 0 : index
    %c0_11 = arith.constant 0 : index
    %6 = vector.load %arg3[%c0_10, %c0_11] : memref<8x1xf32, #tpu.memory_space<vmem>>, vector<8x1xf32>
    %c0_12 = arith.constant 0 : index
    %c0_13 = arith.constant 0 : index
    %c0_14 = arith.constant 0 : index
    %7 = vector.load %arg5[%c0_12, %c0_13, %c0_14] : memref<1x4x130xf32, #tpu.memory_space<vmem>>, vector<1x4x128xf32>
    %8 = vector.shape_cast %7 : vector<1x4x128xf32> to vector<4x128xf32>
    %c0_15 = arith.constant 0 : index
    %c0_16 = arith.constant 0 : index
    %c0_17 = arith.constant 0 : index
    %9 = vector.load %arg2[%c0_15, %c0_16, %c0_17] : memref<3x8x4xf32, #tpu.memory_space<vmem>>, vector<1x8x4xf32>
    %10 = vector.shape_cast %9 : vector<1x8x4xf32> to vector<8x4xf32>
    %cst_18 = arith.constant dense<0.000000e+00> : vector<8x128xf32>
    %11 = tpu.matmul %10, %8, %cst_18 {dimension_numbers = #tpu.dot_dimension_numbers<[1], [0], [0], [1], [0, 0, 1, 1], [], []>} : vector<8x4xf32>, vector<4x128xf32>, vector<8x128xf32> -> vector<8x128xf32>
    %c0_19 = arith.constant 0 : index
    %c0_20 = arith.constant 0 : index
    %c1_21 = arith.constant 1 : index
    %12 = vector.load %arg5[%c0_19, %c0_20, %c1_21] : memref<1x4x130xf32, #tpu.memory_space<vmem>>, vector<1x4x128xf32>
    %13 = vector.shape_cast %12 : vector<1x4x128xf32> to vector<4x128xf32>
    %c1_22 = arith.constant 1 : index
    %c0_23 = arith.constant 0 : index
    %c0_24 = arith.constant 0 : index
    %14 = vector.load %arg2[%c1_22, %c0_23, %c0_24] : memref<3x8x4xf32, #tpu.memory_space<vmem>>, vector<1x8x4xf32>
    %15 = vector.shape_cast %14 : vector<1x8x4xf32> to vector<8x4xf32>
    %cst_25 = arith.constant dense<0.000000e+00> : vector<8x128xf32>
    %16 = tpu.matmul %15, %13, %cst_25 {dimension_numbers = #tpu.dot_dimension_numbers<[1], [0], [0], [1], [0, 0, 1, 1], [], []>} : vector<8x4xf32>, vector<4x128xf32>, vector<8x128xf32> -> vector<8x128xf32>
    %17 = arith.addf %11, %16 : vector<8x128xf32>
    %c0_26 = arith.constant 0 : index
    %c0_27 = arith.constant 0 : index
    %c2 = arith.constant 2 : index
    %18 = vector.load %arg5[%c0_26, %c0_27, %c2] : memref<1x4x130xf32, #tpu.memory_space<vmem>>, vector<1x4x128xf32>
    %19 = vector.shape_cast %18 : vector<1x4x128xf32> to vector<4x128xf32>
    %c2_28 = arith.constant 2 : index
    %c0_29 = arith.constant 0 : index
    %c0_30 = arith.constant 0 : index
    %20 = vector.load %arg2[%c2_28, %c0_29, %c0_30] : memref<3x8x4xf32, #tpu.memory_space<vmem>>, vector<1x8x4xf32>
    %21 = vector.shape_cast %20 : vector<1x8x4xf32> to vector<8x4xf32>
    %cst_31 = arith.constant dense<0.000000e+00> : vector<8x128xf32>
    %22 = tpu.matmul %21, %19, %cst_31 {dimension_numbers = #tpu.dot_dimension_numbers<[1], [0], [0], [1], [0, 0, 1, 1], [], []>} : vector<8x4xf32>, vector<4x128xf32>, vector<8x128xf32> -> vector<8x128xf32>
    %23 = arith.addf %17, %22 : vector<8x128xf32>
    %24 = vector.broadcast %6 : vector<8x1xf32> to vector<8x128xf32>
    %25 = arith.addf %23, %24 : vector<8x128xf32>
    %cst_32 = arith.constant 0.000000e+00 : f32
    %26 = vector.broadcast %cst_32 : f32 to vector<8x128xf32>
    %27 = arith.maximumf %25, %26 : vector<8x128xf32>
    %c0_33 = arith.constant 0 : index
    %c0_34 = arith.constant 0 : index
    %c0_35 = arith.constant 0 : index
    %28 = vector.load %arg4[%c0_33, %c0_34, %c0_35] : memref<1x8x128xf32, #tpu.memory_space<vmem>>, vector<1x8x128xf32>
    %29 = vector.shape_cast %28 : vector<1x8x128xf32> to vector<8x128xf32>
    %30 = vector.shape_cast %27 : vector<8x128xf32> to vector<1x8x128xf32>
    tpu.vector_store %arg4[%c0_33, %c0_34, %c0_35], %30 {strides = array<i32>} : memref<1x8x128xf32, #tpu.memory_space<vmem>>, vector<1x8x128xf32>,
    return
  }
  func.func @transform_0(%arg0: i32) -> (i32, i32, i32) {
    %c0_i32 = arith.constant 0 : i32
    %c0_i32_0 = arith.constant 0 : i32
    %c0_i32_1 = arith.constant 0 : i32
    return %arg0, %c0_i32, %c0_i32_0 : i32, i32, i32
  }
  func.func @transform_1(%arg0: i32) -> (i32, i32, i32) {
    %c0_i32 = arith.constant 0 : i32
    %c0_i32_0 = arith.constant 0 : i32
    %c0_i32_1 = arith.constant 0 : i32
    %c0_i32_2 = arith.constant 0 : i32
    return %c0_i32, %c0_i32_0, %c0_i32_1 : i32, i32, i32
  }
  func.func @transform_2(%arg0: i32) -> (i32, i32) {
    %c0_i32 = arith.constant 0 : i32
    %c0_i32_0 = arith.constant 0 : i32
    %c0_i32_1 = arith.constant 0 : i32
    return %c0_i32, %c0_i32_0 : i32, i32
  }
  func.func @transform_3(%arg0: i32) -> (i32, i32, i32) {
    %c0_i32 = arith.constant 0 : i32
    %c0_i32_0 = arith.constant 0 : i32
    %c0_i32_1 = arith.constant 0 : i32
    return %arg0, %c0_i32, %c0_i32_0 : i32, i32, i32
  }
}

</mosaic_0001>

<llo_original>
// kernel: tpu_custom_call.1
$region0: #{tpu_custom_call.1}
  #allocation0 [shape = 'u32[]', space=smem, size = 0x4, offset = 0x4, fixed_abs, tag = 'smem constant byte address 0x4 - core index']
  #allocation1 [shape = 'u32[144,128]{1,0:T(1,128)}', space=vmem, size = 0x12000, scoped, tag = 'internal scratch']
  #allocation2 [shape = 'f32[1,4,130]{2,1,0:T(4,128)}', space=vmem, size = 0x1000, scoped, tag = 'scratch operand']
  %s0 = inlined_call_operand.vmem [shape: f32[2,4,16], index: 0, kind: input, shape index: {}]
  %s1 = inlined_call_operand.vmem [shape: f32[3,8,4], index: 1, kind: input, shape index: {}]
  %s2 = inlined_call_operand.vmem [shape: f32[8,1], index: 2, kind: input, shape index: {}]
  %s3 = inlined_call_operand.hbm [shape: f32[2,8,128], index: 3, kind: output, shape index: {}]
  %s4 = sld [smem:[#allocation0]]
  $region45: #{tpu_custom_call.1} parent=0
    _
  %s6 = ssub.s32 1, %s4
  %s7 = scalar_select 0, %s6, %s4
  $region1: #{tpu_custom_call.1} parent=0
    #allocation3 [shape = 'u8[8192]{0}', space=vmem, size = 0x2000, scoped, tag = 'output window, operand 0']
    #allocation4 [shape = 's32[2]{0}', space=sflag, size = 0x8, scoped, tag = 'scoped memory for tpu_custom_call.1']
    %8 = vsyncpa [#allocation4], 0
    %s9 = scalar_lea.sflag [#allocation4], 1
    %10 = vsyncpa %s9, 0
    loop: start=0, step=1, limit=4
    $region2: #{tpu_custom_call.1} parent=1 // loop_pre_header
      _
    $region3: #{tpu_custom_call.1} parent=1 // loop_header
      %s12 = sphi 0, %s16
      %p13 = scmp.ge.s32.totalorder %s12, 4
      %s22 = sphi 0, %s24
      %s25 = sphi 0, %s22
      %s26 = sphi 0, %s25
      %s42 = sphi 0, %s26
      %s46 = sphi 0, %s46
      %s48 = sphi 0, %s46
      %s49 = sphi 0, %s48
      %s63 = sphi 0, %s49
      %s67 = sphi 0, %s67
      %s69 = sphi 0, %s67
      %s70 = sphi 0, %s69
      %s84 = sphi 0, %s70
      %s90 = sphi 0, %s92
      %s93 = sphi 0, %s90
      %s94 = sphi 0, %s93
      %s110 = sphi 0, %s94
    $region4: #{tpu_custom_call.1} parent=1 // loop_header_branch
      %15 = sbr.rel (%p13) target = $region8
    $region5: #{tpu_custom_call.1} parent=1 // loop_body
      %s17 = ssub.s32 %s12, 1
      %s18 = ssub.s32 %s12, 2
      %s19 = sadd.s32 %s12, 1
      %s20 = ssub.s32 %s12, %s19
      %p21 = scmp.eq.s32.totalorder %s20, 0
      %s23 = sadd.s32 %s22, 1
      %s24 = scalar_select %p21, %s22, %s23
      %p27 = pneg %p21
      %p28 = scmp.eq.s32.totalorder %s12, 1
      %p29 = por %p27, %p28
      %p30 = scmp.ne.s32.totalorder %s22, %s25
      %p31 = scmp.eq.s32.totalorder %s12, 0
      %p32 = por %p30, %p31
      %p33 = scmp.ne.s32.totalorder %s22, %s25
      %p34 = scmp.eq.s32.totalorder %s17, 1
      %p35 = por %p33, %p34
      %p36 = scmp.ne.s32.totalorder %s25, %s26
      %p37 = scmp.eq.s32.totalorder %s17, 0
      %p38 = por %p36, %p37
      %p39 = scmp.ne.s32.totalorder %s25, %s26
      %p40 = scmp.eq.s32.totalorder %s18, 1
      %p41 = por %p39, %p40
      %p43 = scmp.ne.s32.totalorder %s26, %s42
      %p44 = scmp.eq.s32.totalorder %s18, 0
      %p45 = por %p43, %p44
      %s47 = sadd.s32 %s46, 1
      %p50 = scmp.eq.s32.totalorder %s12, 1
      %p51 = scmp.ne.s32.totalorder %s46, %s48
      %p52 = scmp.eq.s32.totalorder %s12, 0
      %p53 = por %p51, %p52
      %p54 = scmp.ne.s32.totalorder %s46, %s48
      %p55 = scmp.eq.s32.totalorder %s17, 1
      %p56 = por %p54, %p55
      %p57 = scmp.ne.s32.totalorder %s48, %s49
      %p58 = scmp.eq.s32.totalorder %s17, 0
      %p59 = por %p57, %p58
      %p60 = scmp.ne.s32.totalorder %s48, %s49
      %p61 = scmp.eq.s32.totalorder %s18, 1
      %p62 = por %p60, %p61
      %p64 = scmp.ne.s32.totalorder %s49, %s63
      %p65 = scmp.eq.s32.totalorder %s18, 0
      %p66 = por %p64, %p65
      %s68 = sadd.s32 %s67, 1
      %p71 = scmp.eq.s32.totalorder %s12, 1
      %p72 = scmp.ne.s32.totalorder %s67, %s69
      %p73 = scmp.eq.s32.totalorder %s12, 0
      %p74 = por %p72, %p73
      %p75 = scmp.ne.s32.totalorder %s67, %s69
      %p76 = scmp.eq.s32.totalorder %s17, 1
      %p77 = por %p75, %p76
      %p78 = scmp.ne.s32.totalorder %s69, %s70
      %p79 = scmp.eq.s32.totalorder %s17, 0
      %p80 = por %p78, %p79
      %p81 = scmp.ne.s32.totalorder %s69, %s70
      %p82 = scmp.eq.s32.totalorder %s18, 1
      %p83 = por %p81, %p82
      %p85 = scmp.ne.s32.totalorder %s70, %s84
      %p86 = scmp.eq.s32.totalorder %s18, 0
      %p87 = por %p85, %p86
      %s88 = ssub.s32 %s12, %s19
      %p89 = scmp.eq.s32.totalorder %s88, 0
      %s91 = sadd.s32 %s90, 1
      %s92 = scalar_select %p89, %s90, %s91
      %p95 = pneg %p89
      %p96 = scmp.eq.s32.totalorder %s12, 1
      %p97 = por %p95, %p96
      %p98 = scmp.ne.s32.totalorder %s90, %s93
      %p99 = scmp.eq.s32.totalorder %s12, 0
      %p100 = por %p98, %p99
      %p101 = scmp.ne.s32.totalorder %s90, %s93
      %p102 = scmp.eq.s32.totalorder %s17, 1
      %p103 = por %p101, %p102
      %p104 = scmp.ne.s32.totalorder %s93, %s94
      %p105 = scmp.eq.s32.totalorder %s17, 0
      %p106 = por %p104, %p105
      %p107 = scmp.ne.s32.totalorder %s93, %s94
      %p108 = scmp.eq.s32.totalorder %s18, 1
      %p109 = por %p107, %p108
      %p111 = scmp.ne.s32.totalorder %s94, %s110
      %p112 = scmp.eq.s32.totalorder %s18, 0
      %p113 = por %p111, %p112
      %p114 = scmp.le.s32.totalorder 1, %s12
      %p115 = scmp.lt.s32.totalorder %s12, 3
      %p116 = pnand %p114, %p115
      %p117 = pneg %p116
      // Predicated region
      $region9: #{tpu_custom_call.1} parent=5 // pred_check
        _
      $region10: #{tpu_custom_call.1} parent=5 // pred_check_branch
        %119 = sbr.rel (%p116) target = $region12
      $region11: #{tpu_custom_call.1} parent=5 // pred_region
        %s120 = ssub.s32 %s12, 1
        // Predicated region
        $region13: #{tpu_custom_call.1} parent=11 // pred_check
          %p121 = pneg %p59
        $region14: #{tpu_custom_call.1} parent=11 // pred_check_branch
          %123 = sbr.rel (%p121) target = $region16
        $region15: #{tpu_custom_call.1} parent=11 // pred_region
          _
        $region16: #{tpu_custom_call.1} parent=11 // pred_fallthru
          _
        // Predicated region
        $region17: #{tpu_custom_call.1} parent=11 // pred_check
          %p124 = pneg %p80
        $region18: #{tpu_custom_call.1} parent=11 // pred_check_branch
          %126 = sbr.rel (%p124) target = $region20
        $region19: #{tpu_custom_call.1} parent=11 // pred_region
          _
        $region20: #{tpu_custom_call.1} parent=11 // pred_fallthru
          _
      $region12: #{tpu_custom_call.1} parent=5 // pred_fallthru
        _
      %p127 = scmp.lt.s32.totalorder %s12, 2
      // Predicated region
      $region21: #{tpu_custom_call.1} parent=5 // pred_check
        %p128 = pneg %p127
      $region22: #{tpu_custom_call.1} parent=5 // pred_check_branch
        %130 = sbr.rel (%p128) target = $region24
      $region23: #{tpu_custom_call.1} parent=5 // pred_region
        // Predicated region
        $region25: #{tpu_custom_call.1} parent=23 // pred_check
          %p131 = pneg %p32
        $region26: #{tpu_custom_call.1} parent=23 // pred_check_branch
          %133 = sbr.rel (%p131) target = $region28
        $region27: #{tpu_custom_call.1} parent=23 // pred_region
          %p134 = scmp.lt.s32.totalorder %s12, 1
          %s135 = scalar_select %p134, %s12, 1
          %s136 = smul.addr %s135, 4
          %s137 = scalar_lea.vmem %s0, %s136
        $region28: #{tpu_custom_call.1} parent=23 // pred_fallthru
          _
      $region24: #{tpu_custom_call.1} parent=5 // pred_fallthru
        _
      %p138 = scmp.le.s32.totalorder 1, %s12
      %p139 = scmp.lt.s32.totalorder %s12, 3
      %p140 = pnand %p138, %p139
      %p141 = pneg %p140
      // Predicated region
      $region29: #{tpu_custom_call.1} parent=5 // pred_check
        _
      $region30: #{tpu_custom_call.1} parent=5 // pred_check_branch
        %143 = sbr.rel (%p140) target = $region32
      $region31: #{tpu_custom_call.1} parent=5 // pred_region
        %s144 = ssub.s32 %s12, 1
        %p145 = scmp.lt.s32.totalorder %s17, 1
        %s146 = scalar_select %p145, %s17, 1
        %s147 = smul.addr %s146, 4
        %s148 = scalar_lea.vmem %s0, %s147
        %p149 = pneg %p38
        %p150 = pneg %p35
        %p151 = pneg %p59
        %p152 = pneg %p56
        %p153 = pneg %p80
        %p154 = pneg %p77
        %p155 = pneg %p106
        %p156 = pneg %p103
        %s157 = sand.u32 %s93, 1
        %s158 = scalar_lea.sflag [#allocation4], %s157
        %s159 = sand.u32 %s93, 1
        %s160 = smul.addr %s159, 8
        %s161 = scalar_lea.vmem [#allocation3], %s160
        %p162 = scmp.lt.s32.totalorder %s17, 1
        %s163 = scalar_select %p162, %s17, 1
        %s164 = smul.addr %s163, 4
        %s165 = scalar_lea.vmem %s0, %s164
        %vm166 = vcmask 3072
        %167 = vst.msk [vmem:[#allocation2] sm:$0xf] %vm166, 0.0
        %vm168 = vcmask 1043592
        %vm169 = vcmask 15364
        %vm170 = vmor %vm169, %vm168
        %171 = vst.msk [vmem:[#allocation2] sm:$0xff] %vm170, 0.0
        %v172 = vld [vmem:[%s165] sm:$0xf]
        %174 = vrot.lane.b32.xlu0 %v172, 1
        %v175 = vpop.permute.xlu0 %174
        %vm177 = vcmask 134152
        %178 = vst.msk [vmem:[#allocation2] sm:$0xf] %vm177, %v175
        %v179 = vld [vmem:[%s2] sm:$0xff]
        %v180 = vld [vmem:[#allocation2] sm:$0xf]
        %v181 = vld [vmem:[%s1] sm:$0xff]
        %v182 = vld [vmem:[#allocation2] sm:$0xff]
        %s183 = scalar_lea.vmem %s1, 8
        %v184 = vld [vmem:[%s183] sm:$0xff]
        %v186 = vcombine.high %v182, %v182
        %187 = vrot.lane.b32.xlu0 %v182, 127
        %v188 = vpop.permute.xlu0 %187
        %189 = vrot.lane.b32.xlu0 %v186, 127
        %v190 = vpop.permute.xlu0 %189
        %vm191 = vcmask 1039360
        %v192 = vsel %vm191, %v188, %v190
        %vm193 = vcmask 31744
        %v195 = vsel %vm193, %v184, 0
        %vm197 = vcmask 1043456
        %v198 = vsel %vm197, %v192, 0
        %200 = vmatprep.subr.mxu0 0.0
        %201 = vmatpush1.msra.mxu0 %v198
        %202 = vmatprep.subr.mxu0 0.0
        %203 = vmatpush1.msra.mxu0 0.0
        %204 = vmatprep.subr.mxu0 0.0
        %205 = vmatpush1.msra.mxu0 0.0
        %206 = vmatprep.subr.mxu0 0.0
        %207 = vmatpush1.msra.mxu0 0.0
        %208 = vmatprep.subr.mxu0 0.0
        %209 = vmatpush1.msra.mxu0 0.0
        %210 = vmatprep.subr.mxu0 0.0
        %211 = vmatpush1.msra.mxu0 0.0
        %212 = vmatprep.subr.mxu0 0.0
        %213 = vmatpush1.msra.mxu0 0.0
        %214 = vmatprep.subr.mxu0 0.0
        %215 = vmatpush1.msra.mxu0 0.0
        %216 = vmatprep.subr.mxu0 0.0
        %217 = vmatpush1.msra.mxu0 0.0
        %218 = vmatprep.subr.mxu0 0.0
        %219 = vmatpush1.msra.mxu0 0.0
        %220 = vmatprep.subr.mxu0 0.0
        %221 = vmatpush1.msra.mxu0 0.0
        %222 = vmatprep.subr.mxu0 0.0
        %223 = vmatpush1.msra.mxu0 0.0
        %224 = vmatprep.subr.mxu0 0.0
        %225 = vmatpush1.msra.mxu0 0.0
        %226 = vmatprep.subr.mxu0 0.0
        %227 = vmatpush1.msra.mxu0 0.0
        %228 = vmatprep.subr.mxu0 0.0
        %229 = vmatpush1.msra.mxu0 0.0
        %230 = vmatprep.subr.mxu0 0.0
        %231 = vmatpush1.msra.mxu0 0.0
        %232 = vmatprep.subr.mxu0 0.0
        %233 = vmatpush1.msra.mxu0 0.0
        %234 = vmatprep.subr.mxu0 0.0
        %235 = vmatpush1.msra.mxu0 0.0
        %236 = vmatprep.subr.mxu0 0.0
        %237 = vmatpush1.msra.mxu0 0.0
        %238 = vmatprep.subr.mxu0 0.0
        %239 = vmatpush1.msra.mxu0 0.0
        %240 = vmatprep.subr.mxu0 0.0
        %241 = vmatpush1.msra.mxu0 0.0
        %242 = vmatprep.subr.mxu0 0.0
        %243 = vmatpush1.msra.mxu0 0.0
        %244 = vmatprep.subr.mxu0 0.0
        %245 = vmatpush1.msra.mxu0 0.0
        %246 = vmatprep.subr.mxu0 0.0
        %247 = vmatpush1.msra.mxu0 0.0
        %248 = vmatprep.subr.mxu0 0.0
        %249 = vmatpush1.msra.mxu0 0.0
        %250 = vmatprep.subr.mxu0 0.0
        %251 = vmatpush1.msra.mxu0 0.0
        %252 = vmatprep.subr.mxu0 0.0
        %253 = vmatpush1.msra.mxu0 0.0
        %254 = vmatprep.subr.mxu0 0.0
        %255 = vmatpush1.msra.mxu0 0.0
        %256 = vmatprep.subr.mxu0 0.0
        %257 = vmatpush1.msra.mxu0 0.0
        %258 = vmatprep.subr.mxu0 0.0
        %259 = vmatpush1.msra.mxu0 0.0
        %260 = vmatprep.subr.mxu0 0.0
        %261 = vmatpush1.msra.mxu0 0.0
        %262 = vmatprep.subr.mxu0 0.0
        %263 = vmatpush1.msra.mxu0 0.0
        %264 = vmatprep.mubr.f32.mxu0 0.0
        %265 = vmatmul.mubr.f32.gmra.mrb[0].mxu0 %v195
        %v266 = vpop.f32.mrb[0].mxu0
        %v267 = vadd.f32 0.0, %v266
        %v268 = vpop.f32.mrb[0].mxu0
        %269 = vdwg.mxu0
        %v271 = vsel %vm193, %v181, 0
        %v274 = vsel %vm197, %v180, 0
        %276 = vmatprep.subr.mxu0 0.0
        %277 = vmatpush1.msra.mxu0 %v274
        %278 = vmatprep.subr.mxu0 0.0
        %279 = vmatpush1.msra.mxu0 0.0
        %280 = vmatprep.subr.mxu0 0.0
        %281 = vmatpush1.msra.mxu0 0.0
        %282 = vmatprep.subr.mxu0 0.0
        %283 = vmatpush1.msra.mxu0 0.0
        %284 = vmatprep.subr.mxu0 0.0
        %285 = vmatpush1.msra.mxu0 0.0
        %286 = vmatprep.subr.mxu0 0.0
        %287 = vmatpush1.msra.mxu0 0.0
        %288 = vmatprep.subr.mxu0 0.0
        %289 = vmatpush1.msra.mxu0 0.0
        %290 = vmatprep.subr.mxu0 0.0
        %291 = vmatpush1.msra.mxu0 0.0
        %292 = vmatprep.subr.mxu0 0.0
        %293 = vmatpush1.msra.mxu0 0.0
        %294 = vmatprep.subr.mxu0 0.0
        %295 = vmatpush1.msra.mxu0 0.0
        %296 = vmatprep.subr.mxu0 0.0
        %297 = vmatpush1.msra.mxu0 0.0
        %298 = vmatprep.subr.mxu0 0.0
        %299 = vmatpush1.msra.mxu0 0.0
        %300 = vmatprep.subr.mxu0 0.0
        %301 = vmatpush1.msra.mxu0 0.0
        %302 = vmatprep.subr.mxu0 0.0
        %303 = vmatpush1.msra.mxu0 0.0
        %304 = vmatprep.subr.mxu0 0.0
        %305 = vmatpush1.msra.mxu0 0.0
        %306 = vmatprep.subr.mxu0 0.0
        %307 = vmatpush1.msra.mxu0 0.0
        %308 = vmatprep.subr.mxu0 0.0
        %309 = vmatpush1.msra.mxu0 0.0
        %310 = vmatprep.subr.mxu0 0.0
        %311 = vmatpush1.msra.mxu0 0.0
        %312 = vmatprep.subr.mxu0 0.0
        %313 = vmatpush1.msra.mxu0 0.0
        %314 = vmatprep.subr.mxu0 0.0
        %315 = vmatpush1.msra.mxu0 0.0
        %316 = vmatprep.subr.mxu0 0.0
        %317 = vmatpush1.msra.mxu0 0.0
        %318 = vmatprep.subr.mxu0 0.0
        %319 = vmatpush1.msra.mxu0 0.0
        %320 = vmatprep.subr.mxu0 0.0
        %321 = vmatpush1.msra.mxu0 0.0
        %322 = vmatprep.subr.mxu0 0.0
        %323 = vmatpush1.msra.mxu0 0.0
        %324 = vmatprep.subr.mxu0 0.0
        %325 = vmatpush1.msra.mxu0 0.0
        %326 = vmatprep.subr.mxu0 0.0
        %327 = vmatpush1.msra.mxu0 0.0
        %328 = vmatprep.subr.mxu0 0.0
        %329 = vmatpush1.msra.mxu0 0.0
        %330 = vmatprep.subr.mxu0 0.0
        %331 = vmatpush1.msra.mxu0 0.0
        %332 = vmatprep.subr.mxu0 0.0
        %333 = vmatpush1.msra.mxu0 0.0
        %334 = vmatprep.subr.mxu0 0.0
        %335 = vmatpush1.msra.mxu0 0.0
        %336 = vmatprep.subr.mxu0 0.0
        %337 = vmatpush1.msra.mxu0 0.0
        %338 = vmatprep.subr.mxu0 0.0
        %339 = vmatpush1.msra.mxu0 0.0
        %340 = vmatprep.mubr.f32.mxu0 0.0
        %341 = vmatmul.mubr.f32.gmra.mrb[0].mxu0 %v271
        %v342 = vpop.f32.mrb[0].mxu0
        %v343 = vadd.f32 %v267, %v342
        %v344 = vpop.f32.mrb[0].mxu0
        %345 = vdwg.mxu0
        %v346 = vld [vmem:[#allocation2] sm:$0xff]
        %s347 = scalar_lea.vmem %s1, 16
        %v348 = vld [vmem:[%s347] sm:$0xff]
        %v350 = vcombine.high %v346, %v346
        %351 = vrot.lane.b32.xlu0 %v346, 126
        %v352 = vpop.permute.xlu0 %351
        %353 = vrot.lane.b32.xlu0 %v350, 126
        %v354 = vpop.permute.xlu0 %353
        %vm355 = vcmask 1031168
        %v356 = vsel %vm355, %v352, %v354
        %v358 = vsel %vm193, %v348, 0
        %v360 = vsel %vm197, %v356, 0
        %362 = vmatprep.subr.mxu0 0.0
        %363 = vmatpush1.msra.mxu0 %v360
        %364 = vmatprep.subr.mxu0 0.0
        %365 = vmatpush1.msra.mxu0 0.0
        %366 = vmatprep.subr.mxu0 0.0
        %367 = vmatpush1.msra.mxu0 0.0
        %368 = vmatprep.subr.mxu0 0.0
        %369 = vmatpush1.msra.mxu0 0.0
        %370 = vmatprep.subr.mxu0 0.0
        %371 = vmatpush1.msra.mxu0 0.0
        %372 = vmatprep.subr.mxu0 0.0
        %373 = vmatpush1.msra.mxu0 0.0
        %374 = vmatprep.subr.mxu0 0.0
        %375 = vmatpush1.msra.mxu0 0.0
        %376 = vmatprep.subr.mxu0 0.0
        %377 = vmatpush1.msra.mxu0 0.0
        %378 = vmatprep.subr.mxu0 0.0
        %379 = vmatpush1.msra.mxu0 0.0
        %380 = vmatprep.subr.mxu0 0.0
        %381 = vmatpush1.msra.mxu0 0.0
        %382 = vmatprep.subr.mxu0 0.0
        %383 = vmatpush1.msra.mxu0 0.0
        %384 = vmatprep.subr.mxu0 0.0
        %385 = vmatpush1.msra.mxu0 0.0
        %386 = vmatprep.subr.mxu0 0.0
        %387 = vmatpush1.msra.mxu0 0.0
        %388 = vmatprep.subr.mxu0 0.0
        %389 = vmatpush1.msra.mxu0 0.0
        %390 = vmatprep.subr.mxu0 0.0
        %391 = vmatpush1.msra.mxu0 0.0
        %392 = vmatprep.subr.mxu0 0.0
        %393 = vmatpush1.msra.mxu0 0.0
        %394 = vmatprep.subr.mxu0 0.0
        %395 = vmatpush1.msra.mxu0 0.0
        %396 = vmatprep.subr.mxu0 0.0
        %397 = vmatpush1.msra.mxu0 0.0
        %398 = vmatprep.subr.mxu0 0.0
        %399 = vmatpush1.msra.mxu0 0.0
        %400 = vmatprep.subr.mxu0 0.0
        %401 = vmatpush1.msra.mxu0 0.0
        %402 = vmatprep.subr.mxu0 0.0
        %403 = vmatpush1.msra.mxu0 0.0
        %404 = vmatprep.subr.mxu0 0.0
        %405 = vmatpush1.msra.mxu0 0.0
        %406 = vmatprep.subr.mxu0 0.0
        %407 = vmatpush1.msra.mxu0 0.0
        %408 = vmatprep.subr.mxu0 0.0
        %409 = vmatpush1.msra.mxu0 0.0
        %410 = vmatprep.subr.mxu0 0.0
        %411 = vmatpush1.msra.mxu0 0.0
        %412 = vmatprep.subr.mxu0 0.0
        %413 = vmatpush1.msra.mxu0 0.0
        %414 = vmatprep.subr.mxu0 0.0
        %415 = vmatpush1.msra.mxu0 0.0
        %416 = vmatprep.subr.mxu0 0.0
        %417 = vmatpush1.msra.mxu0 0.0
        %418 = vmatprep.subr.mxu0 0.0
        %419 = vmatpush1.msra.mxu0 0.0
        %420 = vmatprep.subr.mxu0 0.0
        %421 = vmatpush1.msra.mxu0 0.0
        %422 = vmatprep.subr.mxu0 0.0
        %423 = vmatpush1.msra.mxu0 0.0
        %424 = vmatprep.subr.mxu0 0.0
        %425 = vmatpush1.msra.mxu0 0.0
        %426 = vmatprep.mubr.f32.mxu0 0.0
        %427 = vmatmul.mubr.f32.gmra.mrb[0].mxu0 %v358
        %v428 = vpop.f32.mrb[0].mxu0
        %v429 = vadd.f32 0.0, %v428
        %v430 = vpop.f32.mrb[0].mxu0
        %431 = vdwg.mxu0
        %v432 = vadd.f32 %v343, %v429
        %434 = vset.pattern.permute.xlu0 0
        %435 = vperm.xlu0 %434, %v179
        %v436 = vpop.permute.xlu0 %435
        %v438 = vadd.f32 %v432, %v436
        %v439 = vmax.f32 %v438, 0.0
        %440 = vst [vmem:[%s161] sm:$0xff] %v439
        %s441 = sand.u32 %s93, 1
        %s442 = scalar_lea.sflag [#allocation4], %s441
        %s443 = sand.u32 %s93, 1
        %s444 = smul.addr %s443, 8
        %s445 = scalar_lea.vmem [#allocation3], %s444
        // Predicated region
        $region33: #{tpu_custom_call.1} parent=31 // pred_check
          %p446 = pneg %p103
        $region34: #{tpu_custom_call.1} parent=31 // pred_check_branch
          %448 = sbr.rel (%p446) target = $region36
        $region35: #{tpu_custom_call.1} parent=31 // pred_region
          %s450 = ssub.s32 128, 128
          %451 = vsyncadd %s442, %s450
          %s452 = smul.addr %s17, 128
          %s453 = scalar_lea.hbm %s3, %s452
          %s455 = sshll.u32 %s445, 4
          %s456 = int_to_ptr.vmem [resolvable:$true] %s455
          %458 = dma.vmem_to_hbm [thread:$0]  %s456, 128, %s453, %s442
        $region36: #{tpu_custom_call.1} parent=31 // pred_fallthru
          _
      $region32: #{tpu_custom_call.1} parent=5 // pred_fallthru
        _
      %p459 = scmp.le.s32.totalorder 2, %s12
      // Predicated region
      $region37: #{tpu_custom_call.1} parent=5 // pred_check
        %p460 = pneg %p459
      $region38: #{tpu_custom_call.1} parent=5 // pred_check_branch
        %462 = sbr.rel (%p460) target = $region40
      $region39: #{tpu_custom_call.1} parent=5 // pred_region
        %s463 = ssub.s32 %s12, 2
        // Predicated region
        $region41: #{tpu_custom_call.1} parent=39 // pred_check
          %p464 = pneg %p109
        $region42: #{tpu_custom_call.1} parent=39 // pred_check_branch
          %466 = sbr.rel (%p464) target = $region44
        $region43: #{tpu_custom_call.1} parent=39 // pred_region
          %s467 = sand.u32 %s94, 1
          %s468 = scalar_lea.sflag [#allocation4], %s467
          %s469 = sand.u32 %s94, 1
          %s470 = smul.addr %s469, 8
          %s471 = scalar_lea.vmem [#allocation3], %s470
          %472 = dma.done %s468, 128
        $region44: #{tpu_custom_call.1} parent=39 // pred_fallthru
          _
      $region40: #{tpu_custom_call.1} parent=5 // pred_fallthru
        _
    $region6: #{tpu_custom_call.1} parent=1 // loop_footer
      %s16 = sadd.s32 1, %s12
    $region7: #{tpu_custom_call.1} parent=1 // loop_footer_branch
      %11 = sbr.rel target = $region3
    $region8: #{tpu_custom_call.1} parent=1 // loop_exit
      _
    %473 = vsyncpa [#allocation4], 1
    %s474 = scalar_lea.sflag [#allocation4], 1
    %475 = vsyncpa %s474, 1

</llo_original>
